<compile_context>
chip_gen: v6e
topology: v6e:2x2x1
jax: 0.10.0
libtpu: 0.0.40
codegen_flags: <defaults>
</compile_context>

<pallas_src>
import jax
import jax.numpy as jnp
from jax.experimental import pallas as pl
from jax.experimental.pallas import tpu as pltpu


def _linear_kernel(x_ref, w_ref, b_ref, o_ref):
    # x_ref: (tm, D), w_ref: (D, tn) MXU-native lane-dense layout,
    # b_ref: (1, tn), o_ref: (tm, tn).
    acc = jnp.dot(x_ref[...], w_ref[...], preferred_element_type=jnp.float32)
    o_ref[...] = (acc + b_ref[...].astype(jnp.float32)).astype(o_ref.dtype)


def _round_up(x, m):
    return ((x + m - 1) // m) * m


def baselines_forward(support_embs, weight, bias, *,
                      tile_m=512, tile_n=512, compute_dtype=None):
    """Training-mode forward of Baselines: scores = support_embs @ weight.T + bias.

    support_embs: (N, D)
    weight:       (C, D)   (PyTorch nn.Linear convention)
    bias:         (C,)
    compute_dtype: optional matmul operand dtype (e.g. jnp.bfloat16) to halve
                   input DMA; accumulation stays f32.
    returns:      (N, C) in support_embs.dtype
    """
    N, D = support_embs.shape
    C = weight.shape[0]
    out_dtype = support_embs.dtype

    cdt = jnp.dtype(compute_dtype) if compute_dtype is not None else jnp.dtype(out_dtype)
    sub = 16 if cdt == jnp.dtype(jnp.bfloat16) else 8
    lane = 128

    tile_m = max(sub, _round_up(tile_m, sub))     # defensive (8,128) alignment
    tile_n = max(lane, _round_up(tile_n, lane))
    C_pad = _round_up(max(C, lane), lane)         # exactly one lane-pad, never more

    # ---- Fast path: single-tile problem -> fused XLA dot wins outright. ----
    if N <= tile_m and C_pad <= tile_n:
        acc = jnp.dot(support_embs.astype(cdt), weight.astype(cdt).T,
                      preferred_element_type=jnp.float32)
        return (acc + bias.astype(jnp.float32)).astype(out_dtype)

    # ---- Kernel path. ----
    tm = min(tile_m, _round_up(N, sub))
    tn = min(tile_n, C_pad)
    grid_m = pl.cdiv(N, tm)
    grid_n = pl.cdiv(C_pad, tn)

    # One-time tiny parameter prep: lane-dense (D, C_pad) weight, padded bias row.
    w_p = jnp.pad(weight, ((0, C_pad - C), (0, 0))).T.astype(cdt)   # (D, C_pad)
    b_p = jnp.pad(bias, ((0, C_pad - C),)).reshape(1, C_pad)
    x = support_embs.astype(cdt)   # no-op unless compute_dtype requested

    # Choose inner (fastest) grid axis so the redundantly re-fetched operand is
    # the cheaper one: classes innermost re-fetches W (grid_m-1 extra passes),
    # rows innermost re-fetches X (grid_n-1 extra passes).
    classes_inner = (grid_m - 1) * C_pad <= (grid_n - 1) * N
    if classes_inner:
        grid = (grid_m, grid_n)
        x_map = lambda i, j: (i, 0)
        w_map = lambda i, j: (0, j)
        b_map = lambda i, j: (0, j)
        o_map = lambda i, j: (i, j)
    else:
        grid = (grid_n, grid_m)
        x_map = lambda j, i: (i, 0)
        w_map = lambda j, i: (0, j)
        b_map = lambda j, i: (0, j)
        o_map = lambda j, i: (i, j)

    # Explicit scoped-VMEM budget (v5e default is only 16 MiB); footprint here
    # is a few MiB, capped at v7x's 64 MiB physical.
    in_b = cdt.itemsize
    out_b = jnp.dtype(out_dtype).itemsize
    tile_bytes = 2 * (tm * D * in_b + D * tn * in_b + tn * 4 + tm * tn * out_b)
    vmem_limit = int(min(64 << 20, max(32 << 20, 2 * tile_bytes)))

    out = pl.pallas_call(
        _linear_kernel,
        out_shape=jax.ShapeDtypeStruct((N, C_pad), out_dtype),
        grid_spec=pltpu.PrefetchScalarGridSpec(
            num_scalar_prefetch=0,
            grid=grid,
            in_specs=[
                pl.BlockSpec((tm, D), x_map),    # rows tiled, full feature dim
                pl.BlockSpec((D, tn), w_map),    # lane-dense MXU-native weight
                pl.BlockSpec((1, tn), b_map),    # 128-multiple bias slice
            ],
            out_specs=pl.BlockSpec((tm, tn), o_map),
        ),
        compiler_params=pltpu.CompilerParams(
            dimension_semantics=("parallel", "parallel"),
            vmem_limit_bytes=vmem_limit,
        ),
    )(x, w_p, b_p)

    return out[:, :C]


if __name__ == "__main__":
    key = jax.random.PRNGKey(0)
    kx, kw, kb, kx2, kw2, kb2, kx3, kw3, kb3 = jax.random.split(key, 9)

    def make_params(kw_, kb_, C, D):
        bound = 1.0 / jnp.sqrt(jnp.float32(D))
        w = jax.random.uniform(kw_, (C, D), jnp.float32, -bound, bound)
        b = jax.random.uniform(kb_, (C,), jnp.float32, -bound, bound)
        return w, b

    # Case 1: typical tiny episode (fast path, grid would be 1x1).
    N, D, C = 64, 32, 16
    w1, b1 = make_params(kw, kb, C, D)
    x1 = jax.random.normal(kx, (N, D), jnp.float32)
    s1 = baselines_forward(x1, w1, b1)
    jax.block_until_ready(s1)
    ref1 = x1 @ w1.T + b1
    assert s1.shape == (N, C)
    assert jnp.allclose(s1, ref1, atol=1e-5, rtol=1e-5)

    # Case 2: kernel path, rows-innermost ordering, ragged last row block.
    N, D, C = 200, 32, 200          # C_pad = 256
    w2, b2 = make_params(kw2, kb2, C, D)
    x2 = jax.random.normal(kx2, (N, D), jnp.float32)
    s2 = baselines_forward(x2, w2, b2, tile_m=64, tile_n=128)
    jax.block_until_ready(s2)
    ref2 = x2 @ w2.T + b2
    assert s2.shape == (N, C)
    assert jnp.allclose(s2, ref2, atol=1e-5, rtol=1e-5)

    # Case 3: kernel path, classes-innermost ordering.
    N, D, C = 256, 32, 300          # C_pad = 384
    w3, b3 = make_params(kw3, kb3, C, D)
    x3 = jax.random.normal(kx3, (N, D), jnp.float32)
    s3 = baselines_forward(x3, w3, b3, tile_m=128, tile_n=128)
    jax.block_until_ready(s3)
    ref3 = x3 @ w3.T + b3
    assert s3.shape == (N, C)
    assert jnp.allclose(s3, ref3, atol=1e-5, rtol=1e-5)

    # Case 4: bf16 operand path (halved input DMA), f32 accumulation.
    s4 = baselines_forward(x2, w2, b2, tile_m=64, tile_n=128,
                           compute_dtype=jnp.bfloat16)
    jax.block_until_ready(s4)
    assert jnp.allclose(s4, ref2, atol=5e-2, rtol=5e-2)

    print("KERNEL_OK")
</pallas_src>

<mosaic_0001>
module attributes {stable_mosaic.version = 11 : i64} {
  func.func @_linear_kernel(%arg0: i32, %arg1: i32, %arg2: memref<64x32xf32, #tpu.memory_space<vmem>>, %arg3: memref<32x128xf32, #tpu.memory_space<vmem>>, %arg4: memref<1x128xf32, #tpu.memory_space<vmem>>, %arg5: memref<64x128xf32, #tpu.memory_space<vmem>>) attributes {dimension_semantics = [#tpu.dimension_semantics<parallel>, #tpu.dimension_semantics<parallel>], iteration_bounds = array<i64: 2, 4>, scalar_prefetch = 0 : i64, scratch_operands = 0 : i64, tpu.core_type = #tpu.core_type<tc>, window_params = [{transform_indices = @transform_0, window_bounds = array<i64: 64, 32>}, {transform_indices = @transform_1, window_bounds = array<i64: 32, 128>}, {transform_indices = @transform_2, window_bounds = array<i64: 1, 128>}, {transform_indices = @transform_3, window_bounds = array<i64: 64, 128>}]} {
    %c0 = arith.constant 0 : index
    %c0_0 = arith.constant 0 : index
    %0 = vector.load %arg2[%c0, %c0_0] : memref<64x32xf32, #tpu.memory_space<vmem>>, vector<64x32xf32>
    %c0_1 = arith.constant 0 : index
    %c0_2 = arith.constant 0 : index
    %1 = vector.load %arg3[%c0_1, %c0_2] : memref<32x128xf32, #tpu.memory_space<vmem>>, vector<32x128xf32>
    %cst = arith.constant dense<0.000000e+00> : vector<64x128xf32>
    %2 = tpu.matmul %0, %1, %cst {dimension_numbers = #tpu.dot_dimension_numbers<[1], [0], [0], [1], [0, 0, 1, 1], [], []>} : vector<64x32xf32>, vector<32x128xf32>, vector<64x128xf32> -> vector<64x128xf32>
    %c0_3 = arith.constant 0 : index
    %c0_4 = arith.constant 0 : index
    %3 = vector.load %arg4[%c0_3, %c0_4] : memref<1x128xf32, #tpu.memory_space<vmem>>, vector<1x128xf32>
    %4 = vector.broadcast %3 : vector<1x128xf32> to vector<64x128xf32>
    %5 = arith.addf %2, %4 : vector<64x128xf32>
    %c0_5 = arith.constant 0 : index
    %c0_6 = arith.constant 0 : index
    %6 = vector.load %arg5[%c0_5, %c0_6] : memref<64x128xf32, #tpu.memory_space<vmem>>, vector<64x128xf32>
    tpu.vector_store %arg5[%c0_5, %c0_6], %5 {strides = array<i32>} : memref<64x128xf32, #tpu.memory_space<vmem>>, vector<64x128xf32>,
    return
  }
  func.func @transform_0(%arg0: i32, %arg1: i32) -> (i32, i32) {
    %c0_i32 = arith.constant 0 : i32
    %c0_i32_0 = arith.constant 0 : i32
    return %arg1, %c0_i32 : i32, i32
  }
  func.func @transform_1(%arg0: i32, %arg1: i32) -> (i32, i32) {
    %c0_i32 = arith.constant 0 : i32
    %c0_i32_0 = arith.constant 0 : i32
    return %c0_i32, %arg0 : i32, i32
  }
  func.func @transform_2(%arg0: i32, %arg1: i32) -> (i32, i32) {
    %c0_i32 = arith.constant 0 : i32
    %c0_i32_0 = arith.constant 0 : i32
    return %c0_i32, %arg0 : i32, i32
  }
  func.func @transform_3(%arg0: i32, %arg1: i32) -> (i32, i32) {
    %c0_i32 = arith.constant 0 : i32
    return %arg1, %arg0 : i32, i32
  }
}

</mosaic_0001>

<llo_original>
// kernel: tpu_custom_call.1
$region0: #{tpu_custom_call.1}
  #allocation0 [shape = 'u32[]', space=smem, size = 0x4, offset = 0x4, fixed_abs, tag = 'smem constant byte address 0x4 - core index']
  #allocation1 [shape = 'u32[144,128]{1,0:T(1,128)}', space=vmem, size = 0x12000, scoped, tag = 'internal scratch']
  %s0 = inlined_call_operand.vmem [shape: f32[200,32], index: 0, kind: input, shape index: {}]
  %s1 = inlined_call_operand.vmem [shape: f32[32,256], index: 1, kind: input, shape index: {}]
  %s2 = inlined_call_operand.vmem [shape: f32[1,256], index: 2, kind: input, shape index: {}]
  %s3 = inlined_call_operand.hbm [shape: f32[200,256], index: 3, kind: output, shape index: {}]
  %s4 = sld [smem:[#allocation0]]
  $region83: #{tpu_custom_call.1} parent=0
    _
  %s6 = ssub.s32 1, %s4
  %s7 = scalar_select 0, %s6, %s4
  $region1: #{tpu_custom_call.1} parent=0
    #allocation2 [shape = 'u8[32768]{0}', space=vmem, size = 0x8000, scoped, tag = 'input window, operand 1']
    #allocation3 [shape = 'u8[65536]{0}', space=vmem, size = 0x10000, scoped, tag = 'output window, operand 0']
    #allocation4 [shape = 's32[2]{0}', space=sflag, size = 0x8, scoped, tag = 'scoped memory for tpu_custom_call.1']
    %8 = vsyncpa [#allocation4], 0
    %s9 = scalar_lea.sflag [#allocation4], 1
    %10 = vsyncpa %s9, 0
    loop: start=0, step=1, limit=10
    $region2: #{tpu_custom_call.1} parent=1 // loop_pre_header
      _
    $region3: #{tpu_custom_call.1} parent=1 // loop_header
      %s12 = sphi 0, %s16
      %p13 = scmp.ge.s32.totalorder %s12, 10
      %s19 = sphi 0, %s31
      %s20 = sphi 0, %s27
      %s21 = sphi 0, %s19
      %s22 = sphi 0, %s20
      %s23 = sphi 0, %s21
      %s24 = sphi 0, %s22
      %s34 = sphi 0, %s36
      %s37 = sphi 0, %s34
      %s38 = sphi 0, %s37
      %s54 = sphi 0, %s38
      %s60 = sphi 0, %s62
      %s63 = sphi 0, %s60
      %s64 = sphi 0, %s63
      %s80 = sphi 0, %s64
      %s86 = sphi 0, %s88
      %s89 = sphi 0, %s86
      %s90 = sphi 0, %s89
      %s106 = sphi 0, %s90
      %s114 = sphi 0, %s116
      %s117 = sphi 0, %s114
      %s118 = sphi 0, %s117
      %s134 = sphi 0, %s118
    $region4: #{tpu_custom_call.1} parent=1 // loop_header_branch
      %15 = sbr.rel (%p13) target = $region8
    $region5: #{tpu_custom_call.1} parent=1 // loop_body
      %s17 = ssub.s32 %s12, 1
      %s18 = ssub.s32 %s12, 2
      %s25 = sadd.s32 1, %s20
      %p26 = scmp.ge.s32.totalorder %s25, 4
      %s27 = scalar_select %p26, 0, %s25
      %s28 = sadd.s32 1, %s19
      %s29 = scalar_select %p26, %s28, %s19
      %p30 = scmp.ge.s32.totalorder %s29, 2
      %s31 = scalar_select %p30, 0, %s29
      %s32 = ssub.s32 %s20, %s27
      %p33 = scmp.eq.s32.totalorder %s32, 0
      %s35 = sadd.s32 %s34, 1
      %s36 = scalar_select %p33, %s34, %s35
      %p39 = pneg %p33
      %p40 = scmp.eq.s32.totalorder %s12, 7
      %p41 = por %p39, %p40
      %p42 = scmp.ne.s32.totalorder %s34, %s37
      %p43 = scmp.eq.s32.totalorder %s12, 0
      %p44 = por %p42, %p43
      %p45 = scmp.ne.s32.totalorder %s34, %s37
      %p46 = scmp.eq.s32.totalorder %s17, 7
      %p47 = por %p45, %p46
      %p48 = scmp.ne.s32.totalorder %s37, %s38
      %p49 = scmp.eq.s32.totalorder %s17, 0
      %p50 = por %p48, %p49
      %p51 = scmp.ne.s32.totalorder %s37, %s38
      %p52 = scmp.eq.s32.totalorder %s18, 7
      %p53 = por %p51, %p52
      %p55 = scmp.ne.s32.totalorder %s38, %s54
      %p56 = scmp.eq.s32.totalorder %s18, 0
      %p57 = por %p55, %p56
      %s58 = ssub.s32 %s19, %s31
      %p59 = scmp.eq.s32.totalorder %s58, 0
      %s61 = sadd.s32 %s60, 1
      %s62 = scalar_select %p59, %s60, %s61
      %p65 = pneg %p59
      %p66 = scmp.eq.s32.totalorder %s12, 7
      %p67 = por %p65, %p66
      %p68 = scmp.ne.s32.totalorder %s60, %s63
      %p69 = scmp.eq.s32.totalorder %s12, 0
      %p70 = por %p68, %p69
      %p71 = scmp.ne.s32.totalorder %s60, %s63
      %p72 = scmp.eq.s32.totalorder %s17, 7
      %p73 = por %p71, %p72
      %p74 = scmp.ne.s32.totalorder %s63, %s64
      %p75 = scmp.eq.s32.totalorder %s17, 0
      %p76 = por %p74, %p75
      %p77 = scmp.ne.s32.totalorder %s63, %s64
      %p78 = scmp.eq.s32.totalorder %s18, 7
      %p79 = por %p77, %p78
      %p81 = scmp.ne.s32.totalorder %s64, %s80
      %p82 = scmp.eq.s32.totalorder %s18, 0
      %p83 = por %p81, %p82
      %s84 = ssub.s32 %s19, %s31
      %p85 = scmp.eq.s32.totalorder %s84, 0
      %s87 = sadd.s32 %s86, 1
      %s88 = scalar_select %p85, %s86, %s87
      %p91 = pneg %p85
      %p92 = scmp.eq.s32.totalorder %s12, 7
      %p93 = por %p91, %p92
      %p94 = scmp.ne.s32.totalorder %s86, %s89
      %p95 = scmp.eq.s32.totalorder %s12, 0
      %p96 = por %p94, %p95
      %p97 = scmp.ne.s32.totalorder %s86, %s89
      %p98 = scmp.eq.s32.totalorder %s17, 7
      %p99 = por %p97, %p98
      %p100 = scmp.ne.s32.totalorder %s89, %s90
      %p101 = scmp.eq.s32.totalorder %s17, 0
      %p102 = por %p100, %p101
      %p103 = scmp.ne.s32.totalorder %s89, %s90
      %p104 = scmp.eq.s32.totalorder %s18, 7
      %p105 = por %p103, %p104
      %p107 = scmp.ne.s32.totalorder %s90, %s106
      %p108 = scmp.eq.s32.totalorder %s18, 0
      %p109 = por %p107, %p108
      %s110 = ssub.s32 %s20, %s27
      %s111 = ssub.s32 %s19, %s31
      %s112 = sor.u32 %s110, %s111
      %p113 = scmp.eq.s32.totalorder %s112, 0
      %s115 = sadd.s32 %s114, 1
      %s116 = scalar_select %p113, %s114, %s115
      %p119 = pneg %p113
      %p120 = scmp.eq.s32.totalorder %s12, 7
      %p121 = por %p119, %p120
      %p122 = scmp.ne.s32.totalorder %s114, %s117
      %p123 = scmp.eq.s32.totalorder %s12, 0
      %p124 = por %p122, %p123
      %p125 = scmp.ne.s32.totalorder %s114, %s117
      %p126 = scmp.eq.s32.totalorder %s17, 7
      %p127 = por %p125, %p126
      %p128 = scmp.ne.s32.totalorder %s117, %s118
      %p129 = scmp.eq.s32.totalorder %s17, 0
      %p130 = por %p128, %p129
      %p131 = scmp.ne.s32.totalorder %s117, %s118
      %p132 = scmp.eq.s32.totalorder %s18, 7
      %p133 = por %p131, %p132
      %p135 = scmp.ne.s32.totalorder %s118, %s134
      %p136 = scmp.eq.s32.totalorder %s18, 0
      %p137 = por %p135, %p136
      %p138 = scmp.le.s32.totalorder 1, %s12
      %p139 = scmp.lt.s32.totalorder %s12, 9
      %p140 = pnand %p138, %p139
      %p141 = pneg %p140
      // Predicated region
      $region9: #{tpu_custom_call.1} parent=5 // pred_check
        _
      $region10: #{tpu_custom_call.1} parent=5 // pred_check_branch
        %143 = sbr.rel (%p140) target = $region12
      $region11: #{tpu_custom_call.1} parent=5 // pred_region
        %s144 = ssub.s32 %s12, 1
      $region12: #{tpu_custom_call.1} parent=5 // pred_fallthru
        _
      %p145 = scmp.lt.s32.totalorder %s12, 8
      // Predicated region
      $region13: #{tpu_custom_call.1} parent=5 // pred_check
        %p146 = pneg %p145
      $region14: #{tpu_custom_call.1} parent=5 // pred_check_branch
        %148 = sbr.rel (%p146) target = $region16
      $region15: #{tpu_custom_call.1} parent=5 // pred_region
        // Predicated region
        $region17: #{tpu_custom_call.1} parent=15 // pred_check
          %p149 = pneg %p44
        $region18: #{tpu_custom_call.1} parent=15 // pred_check_branch
          %151 = sbr.rel (%p149) target = $region20
        $region19: #{tpu_custom_call.1} parent=15 // pred_region
          %s152 = smul.u32 8, %s20
          %s153 = ssub.s32 25, %s152
          %p154 = scmp.lt.s32.totalorder %s153, 8
          %s155 = scalar_select %p154, %s153, 8
          %s156 = smul.u32 128, %s155
          %p157 = scmp.lt.s32.totalorder %s152, 24
          %s158 = scalar_select %p157, %s152, 24
          %s159 = smul.addr %s158, 8
          %s160 = scalar_lea.vmem %s0, %s159
          %s161 = smul.u32 8, %s20
          %s162 = ssub.s32 25, %s161
          %p163 = scmp.lt.s32.totalorder %s162, 8
          %s164 = scalar_select %p163, %s162, 8
          %s165 = smul.u32 128, %s164
        $region20: #{tpu_custom_call.1} parent=15 // pred_fallthru
          _
        // Predicated region
        $region21: #{tpu_custom_call.1} parent=15 // pred_check
          %p166 = pneg %p70
        $region22: #{tpu_custom_call.1} parent=15 // pred_check_branch
          %168 = sbr.rel (%p166) target = $region24
        $region23: #{tpu_custom_call.1} parent=15 // pred_region
          %s169 = sand.u32 %s60, 1
          %s170 = sand.u32 %s60, 1
          %s171 = smul.addr %s170, 32
          %s172 = scalar_lea.vmem [#allocation2], %s171
          %s173 = smul.addr %s19, 8
          %s174 = scalar_lea.vmem %s1, %s173
          // Predicated region
          $region25: #{tpu_custom_call.1} parent=23 // pred_check
            _
          $region26: #{tpu_custom_call.1} parent=23 // pred_check_branch
            %176 = sbr.rel (0) target = $region28
          $region27: #{tpu_custom_call.1} parent=23 // pred_region
            // Predicated region
            $region29: #{tpu_custom_call.1} parent=27 // pred_check
              _
            $region30: #{tpu_custom_call.1} parent=27 // pred_check_branch
              %178 = sbr.rel (0) target = $region32
            $region31: #{tpu_custom_call.1} parent=27 // pred_region
              // Predicated region
              $region44: #{tpu_custom_call.1} parent=31 // pred_check
                _
              $region45: #{tpu_custom_call.1} parent=31 // pred_check_branch
                %200 = sbr.rel (0) target = $region47
              $region46: #{tpu_custom_call.1} parent=31 // pred_region
                loop: start=0, step=1, limit=1
                $region48: #{tpu_custom_call.1} parent=46 // loop_pre_header
                  _
                $region49: #{tpu_custom_call.1} parent=46 // loop_header
                  %s202 = sphi 0, %s206
                  %p203 = scmp.ge.s32.totalorder %s202, 1
                  %s207 = sphi %s174, %s174
                  %s208 = sphi %s172, %s172
                $region50: #{tpu_custom_call.1} parent=46 // loop_header_branch
                  %205 = sbr.rel (%p203) target = $region54
                $region51: #{tpu_custom_call.1} parent=46 // loop_body
                  %v209 = vld [vmem:[%s207] sm:$0xff]
                  %210 = vst [vmem:[%s208] sm:$0xff] %v209
                  %v211 = vld [vmem:[%s207 + $0x10] sm:$0xff]
                  %212 = vst [vmem:[%s208 + $0x8] sm:$0xff] %v211
                  %v213 = vld [vmem:[%s207 + $0x20] sm:$0xff]
                  %214 = vst [vmem:[%s208 + $0x10] sm:$0xff] %v213
                  %v215 = vld [vmem:[%s207 + $0x30] sm:$0xff]
                  %216 = vst [vmem:[%s208 + $0x18] sm:$0xff] %v215
                $region52: #{tpu_custom_call.1} parent=46 // loop_footer
                  %s206 = sadd.s32 1, %s202
                $region53: #{tpu_custom_call.1} parent=46 // loop_footer_branch
                  %201 = sbr.rel target = $region49
                $region54: #{tpu_custom_call.1} parent=46 // loop_exit
                  _
              $region47: #{tpu_custom_call.1} parent=31 // pred_fallthru
                _
              // Predicated region
              $region55: #{tpu_custom_call.1} parent=31 // pred_check
                _
              $region56: #{tpu_custom_call.1} parent=31 // pred_check_branch
                %218 = sbr.rel target = $region58
              $region57: #{tpu_custom_call.1} parent=31 // pred_region
                _
              $region58: #{tpu_custom_call.1} parent=31 // pred_fallthru
                _
            $region32: #{tpu_custom_call.1} parent=27 // pred_fallthru
              _
            // Predicated region
            $region33: #{tpu_custom_call.1} parent=27 // pred_check
              _
            $region34: #{tpu_custom_call.1} parent=27 // pred_check_branch
              %180 = sbr.rel target = $region36
            $region35: #{tpu_custom_call.1} parent=27 // pred_region
              %s182 = ssub.s32 256, 1
              loop: start=0, step=1, limit=1
              $region37: #{tpu_custom_call.1} parent=35 // loop_pre_header
                _
              $region38: #{tpu_custom_call.1} parent=35 // loop_header
                %s184 = sphi 0, %s188
                %p185 = scmp.ge.s32.totalorder %s184, 1
                %s189 = sphi %s174, %s174
                %s190 = sphi %s172, %s172
              $region39: #{tpu_custom_call.1} parent=35 // loop_header_branch
                %187 = sbr.rel (%p185) target = $region43
              $region40: #{tpu_custom_call.1} parent=35 // loop_body
                %v191 = vld [vmem:[%s189] sm:%s182]
                %192 = vst [vmem:[%s190] sm:%s182] %v191
                %v193 = vld [vmem:[%s189 + $0x10] sm:%s182]
                %194 = vst [vmem:[%s190 + $0x8] sm:%s182] %v193
                %v195 = vld [vmem:[%s189 + $0x20] sm:%s182]
                %196 = vst [vmem:[%s190 + $0x10] sm:%s182] %v195
                %v197 = vld [vmem:[%s189 + $0x30] sm:%s182]
                %198 = vst [vmem:[%s190 + $0x18] sm:%s182] %v197
              $region41: #{tpu_custom_call.1} parent=35 // loop_footer
                %s188 = sadd.s32 1, %s184
              $region42: #{tpu_custom_call.1} parent=35 // loop_footer_branch
                %183 = sbr.rel target = $region38
              $region43: #{tpu_custom_call.1} parent=35 // loop_exit
                _
            $region36: #{tpu_custom_call.1} parent=27 // pred_fallthru
              _
          $region28: #{tpu_custom_call.1} parent=23 // pred_fallthru
            _
          %219 = vnop
        $region24: #{tpu_custom_call.1} parent=15 // pred_fallthru
          _
        // Predicated region
        $region59: #{tpu_custom_call.1} parent=15 // pred_check
          %p220 = pneg %p96
        $region60: #{tpu_custom_call.1} parent=15 // pred_check_branch
          %222 = sbr.rel (%p220) target = $region62
        $region61: #{tpu_custom_call.1} parent=15 // pred_region
          %p223 = scmp.lt.s32.totalorder %s19, 1
          %s224 = scalar_select %p223, %s19, 1
          %s225 = scalar_lea.vmem %s2, %s224
        $region62: #{tpu_custom_call.1} parent=15 // pred_fallthru
          _
      $region16: #{tpu_custom_call.1} parent=5 // pred_fallthru
        _
      %p226 = scmp.le.s32.totalorder 1, %s12
      %p227 = scmp.lt.s32.totalorder %s12, 9
      %p228 = pnand %p226, %p227
      %p229 = pneg %p228
      // Predicated region
      $region63: #{tpu_custom_call.1} parent=5 // pred_check
        _
      $region64: #{tpu_custom_call.1} parent=5 // pred_check_branch
        %231 = sbr.rel (%p228) target = $region66
      $region65: #{tpu_custom_call.1} parent=5 // pred_region
        %s232 = ssub.s32 %s12, 1
        %s233 = sand.u32 %s63, 1
        %s234 = sand.u32 %s63, 1
        %s235 = smul.addr %s234, 32
        %s236 = scalar_lea.vmem [#allocation2], %s235
        // Predicated region
        $region67: #{tpu_custom_call.1} parent=65 // pred_check
          %p237 = pneg %p76
        $region68: #{tpu_custom_call.1} parent=65 // pred_check_branch
          %239 = sbr.rel (%p237) target = $region70
        $region69: #{tpu_custom_call.1} parent=65 // pred_region
          _
        $region70: #{tpu_custom_call.1} parent=65 // pred_fallthru
          _
        %s240 = smul.u32 8, %s22
        %s241 = ssub.s32 25, %s240
        %p242 = scmp.lt.s32.totalorder %s241, 8
        %s243 = scalar_select %p242, %s241, 8
        %s244 = smul.u32 128, %s243
        %p245 = scmp.lt.s32.totalorder %s240, 24
        %s246 = scalar_select %p245, %s240, 24
        %s247 = smul.addr %s246, 8
        %s248 = scalar_lea.vmem %s0, %s247
        %p249 = pneg %p50
        %p250 = pneg %p47
        %s251 = sand.u32 %s63, 1
        %s252 = sand.u32 %s63, 1
        %s253 = smul.addr %s252, 32
        %s254 = scalar_lea.vmem [#allocation2], %s253
        %p255 = pneg %p76
        %p256 = pneg %p73
        %p257 = scmp.lt.s32.totalorder %s21, 1
        %s258 = scalar_select %p257, %s21, 1
        %s259 = scalar_lea.vmem %s2, %s258
        %p260 = pneg %p102
        %p261 = pneg %p99
        %p262 = pneg %p130
        %p263 = pneg %p127
        %s264 = sand.u32 %s117, 1
        %s265 = scalar_lea.sflag [#allocation4], %s264
        %s266 = sand.u32 %s117, 1
        %s267 = smul.addr %s266, 64
        %s268 = scalar_lea.vmem [#allocation3], %s267
        %s269 = smul.u32 8, %s22
        %s270 = ssub.s32 25, %s269
        %p271 = scmp.lt.s32.totalorder %s270, 8
        %s272 = scalar_select %p271, %s270, 8
        %s273 = smul.u32 128, %s272
        %p274 = scmp.lt.s32.totalorder %s269, 24
        %s275 = scalar_select %p274, %s269, 24
        %s276 = smul.addr %s275, 8
        %s277 = scalar_lea.vmem %s0, %s276
        %s278 = smul.u32 8, %s22
        %s279 = ssub.s32 25, %s278
        %p280 = scmp.lt.s32.totalorder %s279, 8
        %s281 = scalar_select %p280, %s279, 8
        %s282 = smul.u32 128, %s281
        %p283 = scmp.lt.s32.totalorder %s21, 1
        %s284 = scalar_select %p283, %s21, 1
        %s285 = scalar_lea.vmem %s2, %s284
        %s286 = smul.u32 8, %s22
        %s287 = ssub.s32 25, %s286
        %p288 = scmp.lt.s32.totalorder %s287, 8
        %s289 = scalar_select %p288, %s287, 8
        %s290 = smul.u32 128, %s289
        %v291 = vld [vmem:[%s277] sm:$0xff]
        %v292 = vld [vmem:[%s277 + $0x8] sm:$0xff]
        %v293 = vld [vmem:[%s277 + $0x10] sm:$0xff]
        %v294 = vld [vmem:[%s277 + $0x18] sm:$0xff]
        %v295 = vld [vmem:[%s277 + $0x20] sm:$0xff]
        %v296 = vld [vmem:[%s277 + $0x28] sm:$0xff]
        %v297 = vld [vmem:[%s277 + $0x30] sm:$0xff]
        %v298 = vld [vmem:[%s277 + $0x38] sm:$0xff]
        %v299 = vld [vmem:[%s236] sm:$0xff]
        %v300 = vld [vmem:[%s236 + $0x8] sm:$0xff]
        %v301 = vld [vmem:[%s236 + $0x10] sm:$0xff]
        %v302 = vld [vmem:[%s236 + $0x18] sm:$0xff]
        %v303 = vld [vmem:[%s285] sm:$0x1]
        %v305 = vlaneseq
        %v306 = vshrl.u32 %v305, 7
        %v307 = vsub.s32 0, %v306
        %v308 = vrot.slane %v303, %v307
        %vm310 = vcmask 261120
        %v312 = vsel %vm310, %v291, 0
        %v315 = vsel %vm310, %v292, 0
        %v318 = vsel %vm310, %v293, 0
        %v321 = vsel %vm310, %v294, 0
        %v324 = vsel %vm310, %v295, 0
        %v327 = vsel %vm310, %v296, 0
        %v330 = vsel %vm310, %v297, 0
        %v333 = vsel %vm310, %v298, 0
        %335 = vmatprep.subr.mxu0 0.0
        %336 = vmatpush1.msra.mxu0 0.0
        %337 = vmatprep.subr.mxu0 0.0
        %338 = vmatpush1.msra.mxu0 0.0
        %339 = vmatprep.subr.mxu0 0.0
        %340 = vmatpush1.msra.mxu0 0.0
        %341 = vmatprep.subr.mxu0 0.0
        %342 = vmatpush1.msra.mxu0 0.0
        %343 = vmatprep.subr.mxu0 0.0
        %344 = vmatpush1.msra.mxu0 0.0
        %345 = vmatprep.subr.mxu0 0.0
        %346 = vmatpush1.msra.mxu0 0.0
        %347 = vmatprep.subr.mxu0 0.0
        %348 = vmatpush1.msra.mxu0 0.0
        %349 = vmatprep.subr.mxu0 0.0
        %350 = vmatpush1.msra.mxu0 0.0
        %351 = vmatprep.subr.mxu0 0.0
        %352 = vmatpush1.msra.mxu0 0.0
        %353 = vmatprep.subr.mxu0 0.0
        %354 = vmatpush1.msra.mxu0 0.0
        %355 = vmatprep.subr.mxu0 0.0
        %356 = vmatpush1.msra.mxu0 0.0
        %357 = vmatprep.subr.mxu0 0.0
        %358 = vmatpush1.msra.mxu0 0.0
        %359 = vmatprep.subr.mxu0 0.0
        %360 = vmatpush1.msra.mxu0 %v302
        %361 = vmatprep.subr.mxu0 0.0
        %362 = vmatpush1.msra.mxu0 %v301
        %363 = vmatprep.subr.mxu0 0.0
        %364 = vmatpush1.msra.mxu0 %v300
        %365 = vmatprep.subr.mxu0 0.0
        %366 = vmatpush1.msra.mxu0 %v299
        %367 = vmatprep.subr.mxu0 0.0
        %368 = vmatpush2.msra.mxu0 0.0
        %369 = vmatprep.subr.mxu0 0.0
        %370 = vmatpush2.msra.mxu0 0.0
        %371 = vmatprep.subr.mxu0 0.0
        %372 = vmatpush2.msra.mxu0 0.0
        %373 = vmatprep.subr.mxu0 0.0
        %374 = vmatpush2.msra.mxu0 0.0
        %375 = vmatprep.subr.mxu0 0.0
        %376 = vmatpush2.msra.mxu0 0.0
        %377 = vmatprep.subr.mxu0 0.0
        %378 = vmatpush2.msra.mxu0 0.0
        %379 = vmatprep.subr.mxu0 0.0
        %380 = vmatpush2.msra.mxu0 0.0
        %381 = vmatprep.subr.mxu0 0.0
        %382 = vmatpush2.msra.mxu0 0.0
        %383 = vmatprep.subr.mxu0 0.0
        %384 = vmatpush2.msra.mxu0 0.0
        %385 = vmatprep.subr.mxu0 0.0
        %386 = vmatpush2.msra.mxu0 0.0
        %387 = vmatprep.subr.mxu0 0.0
        %388 = vmatpush2.msra.mxu0 0.0
        %389 = vmatprep.subr.mxu0 0.0
        %390 = vmatpush2.msra.mxu0 0.0
        %391 = vmatprep.subr.mxu0 0.0
        %392 = vmatpush2.msra.mxu0 0.0
        %393 = vmatprep.subr.mxu0 0.0
        %394 = vmatpush2.msra.mxu0 0.0
        %395 = vmatprep.subr.mxu0 0.0
        %396 = vmatpush2.msra.mxu0 0.0
        %397 = vmatprep.subr.mxu0 0.0
        %398 = vmatpush2.msra.mxu0 0.0
        %399 = vmatprep.mubr.f32.mxu0 0.0
        %400 = vmatmul.mubr.f32.gmra.mxu0 %v312
        %v401 = vpop.f32.mrf.mxu0
        %v402 = vadd.f32 %v308, %v401
        %v403 = vpop.f32.mrf.mxu0
        %404 = vmatprep.mubr.f32.mxu0 0.0
        %405 = vmatmul.mubr.f32.gmra.mxu0 %v315
        %v406 = vpop.f32.mrf.mxu0
        %v407 = vadd.f32 %v308, %v406
        %v408 = vpop.f32.mrf.mxu0
        %409 = vmatprep.mubr.f32.mxu0 0.0
        %410 = vmatmul.mubr.f32.gmra.mxu0 %v318
        %v411 = vpop.f32.mrf.mxu0
        %v412 = vadd.f32 %v308, %v411
        %v413 = vpop.f32.mrf.mxu0
        %414 = vmatprep.mubr.f32.mxu0 0.0
        %415 = vmatmul.mubr.f32.gmra.mxu0 %v321
        %v416 = vpop.f32.mrf.mxu0
        %v417 = vadd.f32 %v308, %v416
        %v418 = vpop.f32.mrf.mxu0
        %419 = vmatprep.mubr.f32.mxu0 0.0
        %420 = vmatmul.mubr.f32.gmra.mxu0 %v324
        %v421 = vpop.f32.mrf.mxu0
        %v422 = vadd.f32 %v308, %v421
        %v423 = vpop.f32.mrf.mxu0
        %424 = vmatprep.mubr.f32.mxu0 0.0
        %425 = vmatmul.mubr.f32.gmra.mxu0 %v327
        %v426 = vpop.f32.mrf.mxu0
        %v427 = vadd.f32 %v308, %v426
        %v428 = vpop.f32.mrf.mxu0
        %429 = vmatprep.mubr.f32.mxu0 0.0
        %430 = vmatmul.mubr.f32.gmra.mxu0 %v330
        %v431 = vpop.f32.mrf.mxu0
        %v432 = vadd.f32 %v308, %v431
        %v433 = vpop.f32.mrf.mxu0
        %434 = vmatprep.mubr.f32.mxu0 0.0
        %435 = vmatmul.mubr.f32.gmra.mxu0 %v333
        %v436 = vpop.f32.mrf.mxu0
        %v437 = vadd.f32 %v308, %v436
        %v438 = vpop.f32.mrf.mxu0
        %439 = vdwg.mxu0
        %440 = vst [vmem:[%s268] sm:$0xff] %v402
        %441 = vst [vmem:[%s268 + $0x8] sm:$0xff] %v407
        %442 = vst [vmem:[%s268 + $0x10] sm:$0xff] %v412
        %443 = vst [vmem:[%s268 + $0x18] sm:$0xff] %v417
        %444 = vst [vmem:[%s268 + $0x20] sm:$0xff] %v422
        %445 = vst [vmem:[%s268 + $0x28] sm:$0xff] %v427
        %446 = vst [vmem:[%s268 + $0x30] sm:$0xff] %v432
        %447 = vst [vmem:[%s268 + $0x38] sm:$0xff] %v437
        %s448 = sand.u32 %s117, 1
        %s449 = scalar_lea.sflag [#allocation4], %s448
        %s450 = sand.u32 %s117, 1
        %s451 = smul.addr %s450, 64
        %s452 = scalar_lea.vmem [#allocation3], %s451
        // Predicated region
        $region71: #{tpu_custom_call.1} parent=65 // pred_check
          %p453 = pneg %p127
        $region72: #{tpu_custom_call.1} parent=65 // pred_check_branch
          %455 = sbr.rel (%p453) target = $region74
        $region73: #{tpu_custom_call.1} parent=65 // pred_region
          %s456 = smul.u32 8, %s22
          %s457 = ssub.s32 25, %s456
          %p458 = scmp.lt.s32.totalorder %s457, 8
          %s459 = scalar_select %p458, %s457, 8
          %s460 = smul.u32 128, %s459
          %s462 = ssub.s32 1024, %s460
          %463 = vsyncadd %s449, %s462
          %p464 = scmp.ne.s32.totalorder 0, %s460
          %s465 = smul.addr %s456, 2
          %s466 = sadd.s32 %s21, %s465
          %s467 = smul.addr %s466, 128
          %s468 = scalar_lea.hbm %s3, %s467
          %s469 = smul.u32 8, %s459
          %s470 = sshll.u32 %s452, 4
          %s471 = int_to_ptr.vmem [resolvable:$true] %s470
          %s472 = sshll.u32 %s469, 4
          %476 = dma.vmem_to_hbm [thread:$0]  (%p464), %s471, %s472, %s468, %s449, 128, 256, 8
        $region74: #{tpu_custom_call.1} parent=65 // pred_fallthru
          _
      $region66: #{tpu_custom_call.1} parent=5 // pred_fallthru
        _
      %p477 = scmp.le.s32.totalorder 2, %s12
      // Predicated region
      $region75: #{tpu_custom_call.1} parent=5 // pred_check
        %p478 = pneg %p477
      $region76: #{tpu_custom_call.1} parent=5 // pred_check_branch
        %480 = sbr.rel (%p478) target = $region78
      $region77: #{tpu_custom_call.1} parent=5 // pred_region
        %s481 = ssub.s32 %s12, 2
        // Predicated region
        $region79: #{tpu_custom_call.1} parent=77 // pred_check
          %p482 = pneg %p133
        $region80: #{tpu_custom_call.1} parent=77 // pred_check_branch
          %484 = sbr.rel (%p482) target = $region82
        $region81: #{tpu_custom_call.1} parent=77 // pred_region
          %s485 = sand.u32 %s118, 1
          %s486 = scalar_lea.sflag [#allocation4], %s485
          %s487 = sand.u32 %s118, 1
          %s488 = smul.addr %s487, 64
          %s489 = scalar_lea.vmem [#allocation3], %s488
          %490 = dma.done %s486, 1024
        $region82: #{tpu_custom_call.1} parent=77 // pred_fallthru
          _
      $region78: #{tpu_custom_call.1} parent=5 // pred_fallthru
        _
    $region6: #{tpu_custom_call.1} parent=1 // loop_footer
      %s16 = sadd.s32 1, %s12
    $region7: #{tpu_custom_call.1} parent=1 // loop_footer_branch
      %11 = sbr.rel target = $region3
    $region8: #{tpu_custom_call.1} parent=1 // loop_exit
      _
    %491 = vsyncpa [#allocation4], 1
    %s492 = scalar_lea.sflag [#allocation4], 1
    %493 = vsyncpa %s492, 1

</llo_original>
